<compile_context>
chip_gen: v5e
topology: v5e:2x2
jax: 0.10.0
libtpu: 0.0.40
codegen_flags: <defaults>
</compile_context>

<pallas_src>
import math
import functools

import jax
import jax.numpy as jnp
from jax import lax
from jax.experimental import pallas as pl
from jax.experimental.pallas import tpu as pltpu


def _embed_gather_kernel(ids_ref, table_hbm, out_ref, row_buf, sem, *,
                         scale, tile_t):
    """One token tile: DMA-gather rows of the HBM table, then scale.

    ids_ref:   (n_pad,) int32 token ids in SMEM (scalar prefetch)
    table_hbm: (V, E) embedding table, left in HBM (memory_space=pl.ANY)
    out_ref:   (tile_t, E) output block (VMEM)
    row_buf:   (tile_t, E) VMEM scratch receiving the gathered rows
    sem:       DMA semaphore shared by all row copies of this tile
    """
    base = pl.program_id(0) * tile_t
    unroll = tile_t <= 16

    # Issue every row fetch for this tile before waiting on any of them so
    # the (small) row DMAs overlap each other and the pipelined writeback.
    def issue(t, carry):
        tok = ids_ref[base + t]
        pltpu.make_async_copy(table_hbm.at[tok], row_buf.at[t], sem).start()
        return carry

    lax.fori_loop(0, tile_t, issue, 0, unroll=unroll)

    # Drain the semaphore.  Only the transfer size matters for the wait
    # amount (all rows are the same size), so use a fixed source row and
    # avoid SMEM id reads interleaved with waits.
    def drain(t, carry):
        pltpu.make_async_copy(table_hbm.at[0], row_buf.at[t], sem).wait()
        return carry

    lax.fori_loop(0, tile_t, drain, 0, unroll=unroll)

    # sqrt(d_model) as one VPU multiply over the dense (tile_t, E) block.
    out_ref[...] = (row_buf[...] * jnp.float32(scale)).astype(out_ref.dtype)


def _choose_tile(n_tok, max_tile=512):
    """Pick a token tile: multiple of 8, <= max_tile, >= 2 grid steps if possible."""
    n8 = ((n_tok + 7) // 8) * 8
    tile = max(8, min(max_tile, ((n8 // 2) // 8) * 8))
    n_pad = ((n8 + tile - 1) // tile) * tile
    return tile, n_pad


def token_embedding(x, embed_weight, *, max_tile=512):
    """x: (B, S) int token ids; embed_weight: (V, E) float32 -> (B, S, E)."""
    B, S = x.shape
    V, E = embed_weight.shape
    scale = math.sqrt(E)  # d_model == embed_size

    flat = x.reshape(-1).astype(jnp.int32)
    # Clamp so a bad id can never drive an out-of-bounds HBM DMA (PyTorch
    # would raise; here we clamp and document the difference).
    flat = jnp.clip(flat, 0, V - 1)
    n_tok = flat.shape[0]
    tile_t, n_pad = _choose_tile(n_tok, max_tile)
    # Pad with token id 0 (padding row); padded outputs are sliced away.
    ids = jnp.zeros((n_pad,), dtype=jnp.int32).at[:n_tok].set(flat)

    grid_spec = pltpu.PrefetchScalarGridSpec(
        num_scalar_prefetch=1,
        grid=(n_pad // tile_t,),
        in_specs=[
            # Embedding table stays in HBM; rows are gathered by manual DMA.
            pl.BlockSpec(memory_space=pl.ANY),
        ],
        out_specs=pl.BlockSpec((tile_t, E), lambda i, ids: (i, 0)),
        scratch_shapes=[
            pltpu.VMEM((tile_t, E), embed_weight.dtype),
            pltpu.SemaphoreType.DMA,
        ],
    )

    out_flat = pl.pallas_call(
        functools.partial(_embed_gather_kernel, scale=scale, tile_t=tile_t),
        out_shape=jax.ShapeDtypeStruct((n_pad, E), embed_weight.dtype),
        grid_spec=grid_spec,
        compiler_params=pltpu.CompilerParams(
            dimension_semantics=("parallel",)),
    )(ids, embed_weight)

    return out_flat[:n_tok].reshape(B, S, E)


def make_params(vocab_size, embed_size, key):
    # Mirrors: embed_weight = randn(V, E) * 0.01; embed_weight[0, :] = 0.0
    w = jax.random.normal(key, (vocab_size, embed_size), dtype=jnp.float32) * 0.01
    w = w.at[0, :].set(0.0)  # padding_idx=0 row is zero
    return w


if __name__ == "__main__":
    VOCAB = 64
    EMBED = 128   # d_model (lane-dense: multiple of 128)
    B, S = 2, 8

    key = jax.random.PRNGKey(0)
    k_w, k_x = jax.random.split(key)

    embed_weight = make_params(VOCAB, EMBED, k_w)
    x = jax.random.randint(k_x, (B, S), 0, VOCAB, dtype=jnp.int32)
    x = x.at[0, 0].set(0)  # exercise the padding token

    out = token_embedding(x, embed_weight)
    out = jax.block_until_ready(out)

    # Reference: plain-JAX embedding lookup * sqrt(d_model)
    ref = embed_weight[x] * math.sqrt(EMBED)
    assert out.shape == (B, S, EMBED)
    assert jnp.allclose(out, ref, atol=1e-5, rtol=1e-5)
    assert jnp.allclose(out[0, 0], 0.0)  # padding row stays zero

    print("KERNEL_OK")
</pallas_src>

<mosaic_0001>
module attributes {stable_mosaic.version = 11 : i64} {
  func.func @_embed_gather_kernel(%arg0: i32, %arg1: memref<16xi32, #tpu.memory_space<smem>>, %arg2: memref<64x128xf32, #tpu.memory_space<any>>, %arg3: memref<8x128xf32, #tpu.memory_space<vmem>>, %arg4: memref<8x128xf32, #tpu.memory_space<vmem>>, %arg5: memref<!tpu.dma_semaphore, #tpu.memory_space<semaphore_mem>>) attributes {dimension_semantics = [#tpu.dimension_semantics<parallel>], iteration_bounds = array<i64: 2>, scalar_prefetch = 1 : i64, scratch_operands = 2 : i64, tpu.core_type = #tpu.core_type<tc>, window_params = [{}, {transform_indices = @transform_1, window_bounds = array<i64: 8, 128>}]} {
    %c8_i32 = arith.constant 8 : i32
    %0 = arith.muli %arg0, %c8_i32 : i32
    %c0_i32 = arith.constant 0 : i32
    %1 = arith.addi %0, %c0_i32 : i32
    %2 = arith.index_cast %1 : i32 to index
    %3 = memref.load %arg1[%2] : memref<16xi32, #tpu.memory_space<smem>>
    %c0_i32_0 = arith.constant 0 : i32
    %4 = tpu.memref_slice %arg2[%3, %c0_i32_0] : memref<64x128xf32, #tpu.memory_space<any>> -> memref<1x128xf32, #tpu.memory_space<any>>
    %5 = tpu.memref_squeeze %4 : memref<1x128xf32, #tpu.memory_space<any>> -> memref<128xf32, #tpu.memory_space<any>>
    %c0_i32_1 = arith.constant 0 : i32
    %6 = tpu.memref_slice %arg4[%c0_i32, %c0_i32_1] : memref<8x128xf32, #tpu.memory_space<vmem>> -> memref<1x128xf32, #tpu.memory_space<vmem>>
    %7 = tpu.memref_squeeze %6 : memref<1x128xf32, #tpu.memory_space<vmem>> -> memref<128xf32, #tpu.memory_space<vmem>>
    tpu.enqueue_dma source(%5 : memref<128xf32, #tpu.memory_space<any>>) target(%7 : memref<128xf32, #tpu.memory_space<vmem>>) target_semaphore(%arg5 : memref<!tpu.dma_semaphore, #tpu.memory_space<semaphore_mem>>)
    %c1_i32 = arith.constant 1 : i32
    %8 = arith.addi %0, %c1_i32 : i32
    %9 = arith.index_cast %8 : i32 to index
    %10 = memref.load %arg1[%9] : memref<16xi32, #tpu.memory_space<smem>>
    %c0_i32_2 = arith.constant 0 : i32
    %11 = tpu.memref_slice %arg2[%10, %c0_i32_2] : memref<64x128xf32, #tpu.memory_space<any>> -> memref<1x128xf32, #tpu.memory_space<any>>
    %12 = tpu.memref_squeeze %11 : memref<1x128xf32, #tpu.memory_space<any>> -> memref<128xf32, #tpu.memory_space<any>>
    %c0_i32_3 = arith.constant 0 : i32
    %13 = tpu.memref_slice %arg4[%c1_i32, %c0_i32_3] : memref<8x128xf32, #tpu.memory_space<vmem>> -> memref<1x128xf32, #tpu.memory_space<vmem>>
    %14 = tpu.memref_squeeze %13 : memref<1x128xf32, #tpu.memory_space<vmem>> -> memref<128xf32, #tpu.memory_space<vmem>>
    tpu.enqueue_dma source(%12 : memref<128xf32, #tpu.memory_space<any>>) target(%14 : memref<128xf32, #tpu.memory_space<vmem>>) target_semaphore(%arg5 : memref<!tpu.dma_semaphore, #tpu.memory_space<semaphore_mem>>)
    %c2_i32 = arith.constant 2 : i32
    %15 = arith.addi %0, %c2_i32 : i32
    %16 = arith.index_cast %15 : i32 to index
    %17 = memref.load %arg1[%16] : memref<16xi32, #tpu.memory_space<smem>>
    %c0_i32_4 = arith.constant 0 : i32
    %18 = tpu.memref_slice %arg2[%17, %c0_i32_4] : memref<64x128xf32, #tpu.memory_space<any>> -> memref<1x128xf32, #tpu.memory_space<any>>
    %19 = tpu.memref_squeeze %18 : memref<1x128xf32, #tpu.memory_space<any>> -> memref<128xf32, #tpu.memory_space<any>>
    %c0_i32_5 = arith.constant 0 : i32
    %20 = tpu.memref_slice %arg4[%c2_i32, %c0_i32_5] : memref<8x128xf32, #tpu.memory_space<vmem>> -> memref<1x128xf32, #tpu.memory_space<vmem>>
    %21 = tpu.memref_squeeze %20 : memref<1x128xf32, #tpu.memory_space<vmem>> -> memref<128xf32, #tpu.memory_space<vmem>>
    tpu.enqueue_dma source(%19 : memref<128xf32, #tpu.memory_space<any>>) target(%21 : memref<128xf32, #tpu.memory_space<vmem>>) target_semaphore(%arg5 : memref<!tpu.dma_semaphore, #tpu.memory_space<semaphore_mem>>)
    %c3_i32 = arith.constant 3 : i32
    %22 = arith.addi %0, %c3_i32 : i32
    %23 = arith.index_cast %22 : i32 to index
    %24 = memref.load %arg1[%23] : memref<16xi32, #tpu.memory_space<smem>>
    %c0_i32_6 = arith.constant 0 : i32
    %25 = tpu.memref_slice %arg2[%24, %c0_i32_6] : memref<64x128xf32, #tpu.memory_space<any>> -> memref<1x128xf32, #tpu.memory_space<any>>
    %26 = tpu.memref_squeeze %25 : memref<1x128xf32, #tpu.memory_space<any>> -> memref<128xf32, #tpu.memory_space<any>>
    %c0_i32_7 = arith.constant 0 : i32
    %27 = tpu.memref_slice %arg4[%c3_i32, %c0_i32_7] : memref<8x128xf32, #tpu.memory_space<vmem>> -> memref<1x128xf32, #tpu.memory_space<vmem>>
    %28 = tpu.memref_squeeze %27 : memref<1x128xf32, #tpu.memory_space<vmem>> -> memref<128xf32, #tpu.memory_space<vmem>>
    tpu.enqueue_dma source(%26 : memref<128xf32, #tpu.memory_space<any>>) target(%28 : memref<128xf32, #tpu.memory_space<vmem>>) target_semaphore(%arg5 : memref<!tpu.dma_semaphore, #tpu.memory_space<semaphore_mem>>)
    %c4_i32 = arith.constant 4 : i32
    %29 = arith.addi %0, %c4_i32 : i32
    %30 = arith.index_cast %29 : i32 to index
    %31 = memref.load %arg1[%30] : memref<16xi32, #tpu.memory_space<smem>>
    %c0_i32_8 = arith.constant 0 : i32
    %32 = tpu.memref_slice %arg2[%31, %c0_i32_8] : memref<64x128xf32, #tpu.memory_space<any>> -> memref<1x128xf32, #tpu.memory_space<any>>
    %33 = tpu.memref_squeeze %32 : memref<1x128xf32, #tpu.memory_space<any>> -> memref<128xf32, #tpu.memory_space<any>>
    %c0_i32_9 = arith.constant 0 : i32
    %34 = tpu.memref_slice %arg4[%c4_i32, %c0_i32_9] : memref<8x128xf32, #tpu.memory_space<vmem>> -> memref<1x128xf32, #tpu.memory_space<vmem>>
    %35 = tpu.memref_squeeze %34 : memref<1x128xf32, #tpu.memory_space<vmem>> -> memref<128xf32, #tpu.memory_space<vmem>>
    tpu.enqueue_dma source(%33 : memref<128xf32, #tpu.memory_space<any>>) target(%35 : memref<128xf32, #tpu.memory_space<vmem>>) target_semaphore(%arg5 : memref<!tpu.dma_semaphore, #tpu.memory_space<semaphore_mem>>)
    %c5_i32 = arith.constant 5 : i32
    %36 = arith.addi %0, %c5_i32 : i32
    %37 = arith.index_cast %36 : i32 to index
    %38 = memref.load %arg1[%37] : memref<16xi32, #tpu.memory_space<smem>>
    %c0_i32_10 = arith.constant 0 : i32
    %39 = tpu.memref_slice %arg2[%38, %c0_i32_10] : memref<64x128xf32, #tpu.memory_space<any>> -> memref<1x128xf32, #tpu.memory_space<any>>
    %40 = tpu.memref_squeeze %39 : memref<1x128xf32, #tpu.memory_space<any>> -> memref<128xf32, #tpu.memory_space<any>>
    %c0_i32_11 = arith.constant 0 : i32
    %41 = tpu.memref_slice %arg4[%c5_i32, %c0_i32_11] : memref<8x128xf32, #tpu.memory_space<vmem>> -> memref<1x128xf32, #tpu.memory_space<vmem>>
    %42 = tpu.memref_squeeze %41 : memref<1x128xf32, #tpu.memory_space<vmem>> -> memref<128xf32, #tpu.memory_space<vmem>>
    tpu.enqueue_dma source(%40 : memref<128xf32, #tpu.memory_space<any>>) target(%42 : memref<128xf32, #tpu.memory_space<vmem>>) target_semaphore(%arg5 : memref<!tpu.dma_semaphore, #tpu.memory_space<semaphore_mem>>)
    %c6_i32 = arith.constant 6 : i32
    %43 = arith.addi %0, %c6_i32 : i32
    %44 = arith.index_cast %43 : i32 to index
    %45 = memref.load %arg1[%44] : memref<16xi32, #tpu.memory_space<smem>>
    %c0_i32_12 = arith.constant 0 : i32
    %46 = tpu.memref_slice %arg2[%45, %c0_i32_12] : memref<64x128xf32, #tpu.memory_space<any>> -> memref<1x128xf32, #tpu.memory_space<any>>
    %47 = tpu.memref_squeeze %46 : memref<1x128xf32, #tpu.memory_space<any>> -> memref<128xf32, #tpu.memory_space<any>>
    %c0_i32_13 = arith.constant 0 : i32
    %48 = tpu.memref_slice %arg4[%c6_i32, %c0_i32_13] : memref<8x128xf32, #tpu.memory_space<vmem>> -> memref<1x128xf32, #tpu.memory_space<vmem>>
    %49 = tpu.memref_squeeze %48 : memref<1x128xf32, #tpu.memory_space<vmem>> -> memref<128xf32, #tpu.memory_space<vmem>>
    tpu.enqueue_dma source(%47 : memref<128xf32, #tpu.memory_space<any>>) target(%49 : memref<128xf32, #tpu.memory_space<vmem>>) target_semaphore(%arg5 : memref<!tpu.dma_semaphore, #tpu.memory_space<semaphore_mem>>)
    %c7_i32 = arith.constant 7 : i32
    %50 = arith.addi %0, %c7_i32 : i32
    %51 = arith.index_cast %50 : i32 to index
    %52 = memref.load %arg1[%51] : memref<16xi32, #tpu.memory_space<smem>>
    %c0_i32_14 = arith.constant 0 : i32
    %53 = tpu.memref_slice %arg2[%52, %c0_i32_14] : memref<64x128xf32, #tpu.memory_space<any>> -> memref<1x128xf32, #tpu.memory_space<any>>
    %54 = tpu.memref_squeeze %53 : memref<1x128xf32, #tpu.memory_space<any>> -> memref<128xf32, #tpu.memory_space<any>>
    %c0_i32_15 = arith.constant 0 : i32
    %55 = tpu.memref_slice %arg4[%c7_i32, %c0_i32_15] : memref<8x128xf32, #tpu.memory_space<vmem>> -> memref<1x128xf32, #tpu.memory_space<vmem>>
    %56 = tpu.memref_squeeze %55 : memref<1x128xf32, #tpu.memory_space<vmem>> -> memref<128xf32, #tpu.memory_space<vmem>>
    tpu.enqueue_dma source(%54 : memref<128xf32, #tpu.memory_space<any>>) target(%56 : memref<128xf32, #tpu.memory_space<vmem>>) target_semaphore(%arg5 : memref<!tpu.dma_semaphore, #tpu.memory_space<semaphore_mem>>)
    %c8_i32_16 = arith.constant 8 : i32
    %c0_i32_17 = arith.constant 0 : i32
    %c0_i32_18 = arith.constant 0 : i32
    %c0_i32_19 = arith.constant 0 : i32
    %57 = tpu.memref_slice %arg2[%c0_i32_18, %c0_i32_19] : memref<64x128xf32, #tpu.memory_space<any>> -> memref<1x128xf32, #tpu.memory_space<any>>
    %58 = tpu.memref_squeeze %57 : memref<1x128xf32, #tpu.memory_space<any>> -> memref<128xf32, #tpu.memory_space<any>>
    %c0_i32_20 = arith.constant 0 : i32
    %59 = tpu.memref_slice %arg4[%c0_i32_17, %c0_i32_20] : memref<8x128xf32, #tpu.memory_space<vmem>> -> memref<1x128xf32, #tpu.memory_space<vmem>>
    %60 = tpu.memref_squeeze %59 : memref<1x128xf32, #tpu.memory_space<vmem>> -> memref<128xf32, #tpu.memory_space<vmem>>
    tpu.wait_dma2 semaphore(%arg5 : memref<!tpu.dma_semaphore, #tpu.memory_space<semaphore_mem>>) src(%58 : memref<128xf32, #tpu.memory_space<any>>) dst(%60 : memref<128xf32, #tpu.memory_space<vmem>>)
    %c1_i32_21 = arith.constant 1 : i32
    %c0_i32_22 = arith.constant 0 : i32
    %c0_i32_23 = arith.constant 0 : i32
    %61 = tpu.memref_slice %arg2[%c0_i32_22, %c0_i32_23] : memref<64x128xf32, #tpu.memory_space<any>> -> memref<1x128xf32, #tpu.memory_space<any>>
    %62 = tpu.memref_squeeze %61 : memref<1x128xf32, #tpu.memory_space<any>> -> memref<128xf32, #tpu.memory_space<any>>
    %c0_i32_24 = arith.constant 0 : i32
    %63 = tpu.memref_slice %arg4[%c1_i32_21, %c0_i32_24] : memref<8x128xf32, #tpu.memory_space<vmem>> -> memref<1x128xf32, #tpu.memory_space<vmem>>
    %64 = tpu.memref_squeeze %63 : memref<1x128xf32, #tpu.memory_space<vmem>> -> memref<128xf32, #tpu.memory_space<vmem>>
    tpu.wait_dma2 semaphore(%arg5 : memref<!tpu.dma_semaphore, #tpu.memory_space<semaphore_mem>>) src(%62 : memref<128xf32, #tpu.memory_space<any>>) dst(%64 : memref<128xf32, #tpu.memory_space<vmem>>)
    %c2_i32_25 = arith.constant 2 : i32
    %c0_i32_26 = arith.constant 0 : i32
    %c0_i32_27 = arith.constant 0 : i32
    %65 = tpu.memref_slice %arg2[%c0_i32_26, %c0_i32_27] : memref<64x128xf32, #tpu.memory_space<any>> -> memref<1x128xf32, #tpu.memory_space<any>>
    %66 = tpu.memref_squeeze %65 : memref<1x128xf32, #tpu.memory_space<any>> -> memref<128xf32, #tpu.memory_space<any>>
    %c0_i32_28 = arith.constant 0 : i32
    %67 = tpu.memref_slice %arg4[%c2_i32_25, %c0_i32_28] : memref<8x128xf32, #tpu.memory_space<vmem>> -> memref<1x128xf32, #tpu.memory_space<vmem>>
    %68 = tpu.memref_squeeze %67 : memref<1x128xf32, #tpu.memory_space<vmem>> -> memref<128xf32, #tpu.memory_space<vmem>>
    tpu.wait_dma2 semaphore(%arg5 : memref<!tpu.dma_semaphore, #tpu.memory_space<semaphore_mem>>) src(%66 : memref<128xf32, #tpu.memory_space<any>>) dst(%68 : memref<128xf32, #tpu.memory_space<vmem>>)
    %c3_i32_29 = arith.constant 3 : i32
    %c0_i32_30 = arith.constant 0 : i32
    %c0_i32_31 = arith.constant 0 : i32
    %69 = tpu.memref_slice %arg2[%c0_i32_30, %c0_i32_31] : memref<64x128xf32, #tpu.memory_space<any>> -> memref<1x128xf32, #tpu.memory_space<any>>
    %70 = tpu.memref_squeeze %69 : memref<1x128xf32, #tpu.memory_space<any>> -> memref<128xf32, #tpu.memory_space<any>>
    %c0_i32_32 = arith.constant 0 : i32
    %71 = tpu.memref_slice %arg4[%c3_i32_29, %c0_i32_32] : memref<8x128xf32, #tpu.memory_space<vmem>> -> memref<1x128xf32, #tpu.memory_space<vmem>>
    %72 = tpu.memref_squeeze %71 : memref<1x128xf32, #tpu.memory_space<vmem>> -> memref<128xf32, #tpu.memory_space<vmem>>
    tpu.wait_dma2 semaphore(%arg5 : memref<!tpu.dma_semaphore, #tpu.memory_space<semaphore_mem>>) src(%70 : memref<128xf32, #tpu.memory_space<any>>) dst(%72 : memref<128xf32, #tpu.memory_space<vmem>>)
    %c4_i32_33 = arith.constant 4 : i32
    %c0_i32_34 = arith.constant 0 : i32
    %c0_i32_35 = arith.constant 0 : i32
    %73 = tpu.memref_slice %arg2[%c0_i32_34, %c0_i32_35] : memref<64x128xf32, #tpu.memory_space<any>> -> memref<1x128xf32, #tpu.memory_space<any>>
    %74 = tpu.memref_squeeze %73 : memref<1x128xf32, #tpu.memory_space<any>> -> memref<128xf32, #tpu.memory_space<any>>
    %c0_i32_36 = arith.constant 0 : i32
    %75 = tpu.memref_slice %arg4[%c4_i32_33, %c0_i32_36] : memref<8x128xf32, #tpu.memory_space<vmem>> -> memref<1x128xf32, #tpu.memory_space<vmem>>
    %76 = tpu.memref_squeeze %75 : memref<1x128xf32, #tpu.memory_space<vmem>> -> memref<128xf32, #tpu.memory_space<vmem>>
    tpu.wait_dma2 semaphore(%arg5 : memref<!tpu.dma_semaphore, #tpu.memory_space<semaphore_mem>>) src(%74 : memref<128xf32, #tpu.memory_space<any>>) dst(%76 : memref<128xf32, #tpu.memory_space<vmem>>)
    %c5_i32_37 = arith.constant 5 : i32
    %c0_i32_38 = arith.constant 0 : i32
    %c0_i32_39 = arith.constant 0 : i32
    %77 = tpu.memref_slice %arg2[%c0_i32_38, %c0_i32_39] : memref<64x128xf32, #tpu.memory_space<any>> -> memref<1x128xf32, #tpu.memory_space<any>>
    %78 = tpu.memref_squeeze %77 : memref<1x128xf32, #tpu.memory_space<any>> -> memref<128xf32, #tpu.memory_space<any>>
    %c0_i32_40 = arith.constant 0 : i32
    %79 = tpu.memref_slice %arg4[%c5_i32_37, %c0_i32_40] : memref<8x128xf32, #tpu.memory_space<vmem>> -> memref<1x128xf32, #tpu.memory_space<vmem>>
    %80 = tpu.memref_squeeze %79 : memref<1x128xf32, #tpu.memory_space<vmem>> -> memref<128xf32, #tpu.memory_space<vmem>>
    tpu.wait_dma2 semaphore(%arg5 : memref<!tpu.dma_semaphore, #tpu.memory_space<semaphore_mem>>) src(%78 : memref<128xf32, #tpu.memory_space<any>>) dst(%80 : memref<128xf32, #tpu.memory_space<vmem>>)
    %c6_i32_41 = arith.constant 6 : i32
    %c0_i32_42 = arith.constant 0 : i32
    %c0_i32_43 = arith.constant 0 : i32
    %81 = tpu.memref_slice %arg2[%c0_i32_42, %c0_i32_43] : memref<64x128xf32, #tpu.memory_space<any>> -> memref<1x128xf32, #tpu.memory_space<any>>
    %82 = tpu.memref_squeeze %81 : memref<1x128xf32, #tpu.memory_space<any>> -> memref<128xf32, #tpu.memory_space<any>>
    %c0_i32_44 = arith.constant 0 : i32
    %83 = tpu.memref_slice %arg4[%c6_i32_41, %c0_i32_44] : memref<8x128xf32, #tpu.memory_space<vmem>> -> memref<1x128xf32, #tpu.memory_space<vmem>>
    %84 = tpu.memref_squeeze %83 : memref<1x128xf32, #tpu.memory_space<vmem>> -> memref<128xf32, #tpu.memory_space<vmem>>
    tpu.wait_dma2 semaphore(%arg5 : memref<!tpu.dma_semaphore, #tpu.memory_space<semaphore_mem>>) src(%82 : memref<128xf32, #tpu.memory_space<any>>) dst(%84 : memref<128xf32, #tpu.memory_space<vmem>>)
    %c7_i32_45 = arith.constant 7 : i32
    %c0_i32_46 = arith.constant 0 : i32
    %c0_i32_47 = arith.constant 0 : i32
    %85 = tpu.memref_slice %arg2[%c0_i32_46, %c0_i32_47] : memref<64x128xf32, #tpu.memory_space<any>> -> memref<1x128xf32, #tpu.memory_space<any>>
    %86 = tpu.memref_squeeze %85 : memref<1x128xf32, #tpu.memory_space<any>> -> memref<128xf32, #tpu.memory_space<any>>
    %c0_i32_48 = arith.constant 0 : i32
    %87 = tpu.memref_slice %arg4[%c7_i32_45, %c0_i32_48] : memref<8x128xf32, #tpu.memory_space<vmem>> -> memref<1x128xf32, #tpu.memory_space<vmem>>
    %88 = tpu.memref_squeeze %87 : memref<1x128xf32, #tpu.memory_space<vmem>> -> memref<128xf32, #tpu.memory_space<vmem>>
    tpu.wait_dma2 semaphore(%arg5 : memref<!tpu.dma_semaphore, #tpu.memory_space<semaphore_mem>>) src(%86 : memref<128xf32, #tpu.memory_space<any>>) dst(%88 : memref<128xf32, #tpu.memory_space<vmem>>)
    %c8_i32_49 = arith.constant 8 : i32
    %c0 = arith.constant 0 : index
    %c0_50 = arith.constant 0 : index
    %89 = vector.load %arg4[%c0, %c0_50] : memref<8x128xf32, #tpu.memory_space<vmem>>, vector<8x128xf32>
    %cst = arith.constant 11.3137083 : f32
    %90 = vector.broadcast %cst : f32 to vector<8x128xf32>
    %91 = arith.mulf %89, %90 : vector<8x128xf32>
    %c0_51 = arith.constant 0 : index
    %c0_52 = arith.constant 0 : index
    %92 = vector.load %arg3[%c0_51, %c0_52] : memref<8x128xf32, #tpu.memory_space<vmem>>, vector<8x128xf32>
    tpu.vector_store %arg3[%c0_51, %c0_52], %91 {strides = array<i32>} : memref<8x128xf32, #tpu.memory_space<vmem>>, vector<8x128xf32>,
    return
  }
  func.func @transform_1(%arg0: i32, %arg1: memref<16xi32, #tpu.memory_space<smem>>) -> (i32, i32) {
    %c0_i32 = arith.constant 0 : i32
    %c0_i32_0 = arith.constant 0 : i32
    return %arg0, %c0_i32 : i32, i32
  }
}

</mosaic_0001>

<llo_original>
// kernel: tpu_custom_call.1
$region0: #{tpu_custom_call.1}
  #allocation0 [shape = 'u32[]', space=smem, size = 0x4, offset = 0x4, fixed_abs, tag = 'smem constant byte address 0x4 - core index']
  #allocation1 [shape = 'u32[72,128]{1,0:T(1,128)}', space=vmem, size = 0x9000, scoped, tag = 'internal scratch']
  #allocation2 [shape = 'f32[8,128]{1,0:T(8,128)}', space=vmem, size = 0x1000, scoped, tag = 'scratch operand']
  #allocation3 [shape = 's32[1]{0}', space=sflag, size = 0x4, scoped, tag = 'scratch operand']
  #allocation4 [shape = 's32[1]{0}', space=sflag, size = 0x4, scoped, tag = 'scoped memory for tpu_custom_call.1']
  #allocation5 [shape = 'u8[512]{0}', space=smem, size = 0x200, scoped, tag = 'prefetched SMEM operand 0']
  #allocation8 [shape = 's32[]', space=sflag, size = 0x4, offset = 0, fixed_abs, tag = 'sflag constant byte address 0x0 - dummy sync flag']
  #allocation9 [shape = 's32[]', space=sflag, size = 0x4, offset = 0, fixed_abs, tag = 'sflag constant byte address 0x0 - dummy sync flag']
  #allocation10 [shape = 'u32[]', space=smem, size = 0x4, offset = 0x44, fixed_abs, tag = 'smem constant byte address 0x44 - assertion arg 0']
  #allocation11 [shape = 'u32[]', space=smem, size = 0x4, offset = 0x48, fixed_abs, tag = 'smem constant byte address 0x48 - assertion arg 1']
  #allocation12 [shape = 's32[]', space=sflag, size = 0x4, offset = 0, fixed_abs, tag = 'sflag constant byte address 0x0 - dummy sync flag']
  #allocation13 [shape = 's32[]', space=sflag, size = 0x4, offset = 0, fixed_abs, tag = 'sflag constant byte address 0x0 - dummy sync flag']
  #allocation14 [shape = 's32[]', space=sflag, size = 0x4, offset = 0, fixed_abs, tag = 'sflag constant byte address 0x0 - dummy sync flag']
  #allocation15 [shape = 's32[]', space=sflag, size = 0x4, offset = 0, fixed_abs, tag = 'sflag constant byte address 0x0 - dummy sync flag']
  #allocation16 [shape = 's32[]', space=sflag, size = 0x4, offset = 0, fixed_abs, tag = 'sflag constant byte address 0x0 - dummy sync flag']
  #allocation17 [shape = 's32[]', space=sflag, size = 0x4, offset = 0, fixed_abs, tag = 'sflag constant byte address 0x0 - dummy sync flag']
  #allocation18 [shape = 's32[]', space=sflag, size = 0x4, offset = 0, fixed_abs, tag = 'sflag constant byte address 0x0 - dummy sync flag']
  #allocation19 [shape = 's32[]', space=sflag, size = 0x4, offset = 0, fixed_abs, tag = 'sflag constant byte address 0x0 - dummy sync flag']
  #allocation20 [shape = 's32[]', space=sflag, size = 0x4, offset = 0, fixed_abs, tag = 'sflag constant byte address 0x0 - dummy sync flag']
  #allocation21 [shape = 's32[]', space=sflag, size = 0x4, offset = 0, fixed_abs, tag = 'sflag constant byte address 0x0 - dummy sync flag']
  #allocation22 [shape = 's32[]', space=sflag, size = 0x4, offset = 0, fixed_abs, tag = 'sflag constant byte address 0x0 - dummy sync flag']
  #allocation23 [shape = 's32[]', space=sflag, size = 0x4, offset = 0, fixed_abs, tag = 'sflag constant byte address 0x0 - dummy sync flag']
  #allocation24 [shape = 's32[]', space=sflag, size = 0x4, offset = 0, fixed_abs, tag = 'sflag constant byte address 0x0 - dummy sync flag']
  #allocation25 [shape = 's32[]', space=sflag, size = 0x4, offset = 0, fixed_abs, tag = 'sflag constant byte address 0x0 - dummy sync flag']
  %s0 = inlined_call_operand.hbm [shape: s32[16], index: 0, kind: input, shape index: {}]
  %s1 = inlined_call_operand.hbm [shape: f32[64,128], index: 1, kind: input, shape index: {}]
  %s2 = inlined_call_operand.hbm [shape: f32[16,128], index: 2, kind: output, shape index: {}]
  %s3 = sld [smem:[#allocation0]]
  $region57: #{tpu_custom_call.1} parent=0
    _
  %s5 = ssub.s32 1, %s3
  %s6 = scalar_select 0, %s5, %s3
  %s8 = sshll.u32 %s0, 4
  %s9 = int_to_ptr.hbm [resolvable:$true] %s8
  %11 = dma.hbm_to_smem %s9, 16, [#allocation5], [#allocation4]
  %13 = dma.done [#allocation4], 16
  %14 = sfence
  $region1: #{tpu_custom_call.1} parent=0
    #allocation6 [shape = 'u8[8192]{0}', space=vmem, size = 0x2000, scoped, tag = 'output window, operand 0']
    #allocation7 [shape = 's32[2]{0}', space=sflag, size = 0x8, scoped, tag = 'scoped memory for tpu_custom_call.1']
    %15 = vsyncpa [#allocation7], 0
    %s16 = scalar_lea.sflag [#allocation7], 1
    %17 = vsyncpa %s16, 0
    loop: start=0, step=1, limit=3
    $region2: #{tpu_custom_call.1} parent=1 // loop_pre_header
      _
    $region3: #{tpu_custom_call.1} parent=1 // loop_header
      %s19 = sphi 0, %s23
      %p20 = scmp.ge.s32.totalorder %s19, 3
      %s28 = sphi 0, %s30
      %s31 = sphi 0, %s28
      %s41 = sphi 0, %s31
    $region4: #{tpu_custom_call.1} parent=1 // loop_header_branch
      %22 = sbr.rel (%p20) target = $region8
    $region5: #{tpu_custom_call.1} parent=1 // loop_body
      %s24 = ssub.s32 %s19, 1
      %s25 = sadd.s32 %s19, 1
      %s26 = ssub.s32 %s19, %s25
      %p27 = scmp.eq.s32.totalorder %s26, 0
      %s29 = sadd.s32 %s28, 1
      %s30 = scalar_select %p27, %s28, %s29
      %p32 = pneg %p27
      %p33 = scmp.eq.s32.totalorder %s19, 1
      %p34 = por %p32, %p33
      %p35 = scmp.ne.s32.totalorder %s28, %s31
      %p36 = scmp.eq.s32.totalorder %s19, 0
      %p37 = por %p35, %p36
      %p38 = scmp.ne.s32.totalorder %s28, %s31
      %p39 = scmp.eq.s32.totalorder %s24, 1
      %p40 = por %p38, %p39
      %p42 = scmp.ne.s32.totalorder %s31, %s41
      %p43 = scmp.eq.s32.totalorder %s24, 0
      %p44 = por %p42, %p43
      %p45 = scmp.lt.s32.totalorder %s19, 2
      // Predicated region
      $region9: #{tpu_custom_call.1} parent=5 // pred_check
        %p46 = pneg %p45
      $region10: #{tpu_custom_call.1} parent=5 // pred_check_branch
        %48 = sbr.rel (%p46) target = $region12
      $region11: #{tpu_custom_call.1} parent=5 // pred_region
        %p49 = pneg %p37
        %p50 = pneg %p34
        %s51 = sand.u32 %s28, 1
        %s52 = scalar_lea.sflag [#allocation7], %s51
        %s53 = sand.u32 %s28, 1
        %s54 = smul.addr %s53, 8
        %s55 = scalar_lea.vmem [#allocation6], %s54
        %s56 = smul.u32 %s19, 8
        %s57 = sld [smem:[#allocation5 + %s56]]
        %s58 = scalar_lea.hbm %s1, %s57
        // Predicated region
        $region13: #{tpu_custom_call.1} parent=11 // pred_check
          _
        $region14: #{tpu_custom_call.1} parent=11 // pred_check_branch
          %60 = sbr.rel target = $region16
        $region15: #{tpu_custom_call.1} parent=11 // pred_region
          %61 = sst [smem:[#allocation10]] [#allocation9]
          %62 = sst [smem:[#allocation11]] [#allocation8]
        $region16: #{tpu_custom_call.1} parent=11 // pred_fallthru
          _
        %64 = shalt.err (0)
        %s66 = sshll.u32 %s58, 4
        %s67 = int_to_ptr.hbm [resolvable:$true] %s66
        %s68 = sshll.u32 [#allocation2], 4
        %s69 = int_to_ptr.vmem [resolvable:$true] %s68
        %71 = dma.hbm_to_vmem [thread:$0]  %s67, 16, %s69, [#allocation3]
        %s72 = sadd.s32 %s56, 1
        %s73 = sld [smem:[#allocation5 + %s72]]
        %s74 = scalar_lea.hbm %s1, %s73
        %s75 = scalar_lea.vmem [#allocation2], 1
        // Predicated region
        $region17: #{tpu_custom_call.1} parent=11 // pred_check
          _
        $region18: #{tpu_custom_call.1} parent=11 // pred_check_branch
          %77 = sbr.rel target = $region20
        $region19: #{tpu_custom_call.1} parent=11 // pred_region
          %78 = sst [smem:[#allocation10]] [#allocation13]
          %79 = sst [smem:[#allocation11]] [#allocation12]
        $region20: #{tpu_custom_call.1} parent=11 // pred_fallthru
          _
        %81 = shalt.err (0)
        %s83 = sshll.u32 %s74, 4
        %s84 = int_to_ptr.hbm [resolvable:$true] %s83
        %s85 = sshll.u32 %s75, 4
        %s86 = int_to_ptr.vmem [resolvable:$true] %s85
        %88 = dma.hbm_to_vmem [thread:$0]  %s84, 16, %s86, [#allocation3]
        %s89 = sadd.s32 %s56, 2
        %s90 = sld [smem:[#allocation5 + %s89]]
        %s91 = scalar_lea.hbm %s1, %s90
        %s92 = scalar_lea.vmem [#allocation2], 2
        // Predicated region
        $region21: #{tpu_custom_call.1} parent=11 // pred_check
          _
        $region22: #{tpu_custom_call.1} parent=11 // pred_check_branch
          %94 = sbr.rel target = $region24
        $region23: #{tpu_custom_call.1} parent=11 // pred_region
          %95 = sst [smem:[#allocation10]] [#allocation15]
          %96 = sst [smem:[#allocation11]] [#allocation14]
        $region24: #{tpu_custom_call.1} parent=11 // pred_fallthru
          _
        %98 = shalt.err (0)
        %s100 = sshll.u32 %s91, 4
        %s101 = int_to_ptr.hbm [resolvable:$true] %s100
        %s102 = sshll.u32 %s92, 4
        %s103 = int_to_ptr.vmem [resolvable:$true] %s102
        %105 = dma.hbm_to_vmem [thread:$0]  %s101, 16, %s103, [#allocation3]
        %s106 = sadd.s32 %s56, 3
        %s107 = sld [smem:[#allocation5 + %s106]]
        %s108 = scalar_lea.hbm %s1, %s107
        %s109 = scalar_lea.vmem [#allocation2], 3
        // Predicated region
        $region25: #{tpu_custom_call.1} parent=11 // pred_check
          _
        $region26: #{tpu_custom_call.1} parent=11 // pred_check_branch
          %111 = sbr.rel target = $region28
        $region27: #{tpu_custom_call.1} parent=11 // pred_region
          %112 = sst [smem:[#allocation10]] [#allocation17]
          %113 = sst [smem:[#allocation11]] [#allocation16]
        $region28: #{tpu_custom_call.1} parent=11 // pred_fallthru
          _
        %115 = shalt.err (0)
        %s117 = sshll.u32 %s108, 4
        %s118 = int_to_ptr.hbm [resolvable:$true] %s117
        %s119 = sshll.u32 %s109, 4
        %s120 = int_to_ptr.vmem [resolvable:$true] %s119
        %122 = dma.hbm_to_vmem [thread:$0]  %s118, 16, %s120, [#allocation3]
        %s123 = sadd.s32 %s56, 4
        %s124 = sld [smem:[#allocation5 + %s123]]
        %s125 = scalar_lea.hbm %s1, %s124
        %s126 = scalar_lea.vmem [#allocation2], 4
        // Predicated region
        $region29: #{tpu_custom_call.1} parent=11 // pred_check
          _
        $region30: #{tpu_custom_call.1} parent=11 // pred_check_branch
          %128 = sbr.rel target = $region32
        $region31: #{tpu_custom_call.1} parent=11 // pred_region
          %129 = sst [smem:[#allocation10]] [#allocation19]
          %130 = sst [smem:[#allocation11]] [#allocation18]
        $region32: #{tpu_custom_call.1} parent=11 // pred_fallthru
          _
        %132 = shalt.err (0)
        %s134 = sshll.u32 %s125, 4
        %s135 = int_to_ptr.hbm [resolvable:$true] %s134
        %s136 = sshll.u32 %s126, 4
        %s137 = int_to_ptr.vmem [resolvable:$true] %s136
        %139 = dma.hbm_to_vmem [thread:$0]  %s135, 16, %s137, [#allocation3]
        %s140 = sadd.s32 %s56, 5
        %s141 = sld [smem:[#allocation5 + %s140]]
        %s142 = scalar_lea.hbm %s1, %s141
        %s143 = scalar_lea.vmem [#allocation2], 5
        // Predicated region
        $region33: #{tpu_custom_call.1} parent=11 // pred_check
          _
        $region34: #{tpu_custom_call.1} parent=11 // pred_check_branch
          %145 = sbr.rel target = $region36
        $region35: #{tpu_custom_call.1} parent=11 // pred_region
          %146 = sst [smem:[#allocation10]] [#allocation21]
          %147 = sst [smem:[#allocation11]] [#allocation20]
        $region36: #{tpu_custom_call.1} parent=11 // pred_fallthru
          _
        %149 = shalt.err (0)
        %s151 = sshll.u32 %s142, 4
        %s152 = int_to_ptr.hbm [resolvable:$true] %s151
        %s153 = sshll.u32 %s143, 4
        %s154 = int_to_ptr.vmem [resolvable:$true] %s153
        %156 = dma.hbm_to_vmem [thread:$0]  %s152, 16, %s154, [#allocation3]
        %s157 = sadd.s32 %s56, 6
        %s158 = sld [smem:[#allocation5 + %s157]]
        %s159 = scalar_lea.hbm %s1, %s158
        %s160 = scalar_lea.vmem [#allocation2], 6
        // Predicated region
        $region37: #{tpu_custom_call.1} parent=11 // pred_check
          _
        $region38: #{tpu_custom_call.1} parent=11 // pred_check_branch
          %162 = sbr.rel target = $region40
        $region39: #{tpu_custom_call.1} parent=11 // pred_region
          %163 = sst [smem:[#allocation10]] [#allocation23]
          %164 = sst [smem:[#allocation11]] [#allocation22]
        $region40: #{tpu_custom_call.1} parent=11 // pred_fallthru
          _
        %166 = shalt.err (0)
        %s168 = sshll.u32 %s159, 4
        %s169 = int_to_ptr.hbm [resolvable:$true] %s168
        %s170 = sshll.u32 %s160, 4
        %s171 = int_to_ptr.vmem [resolvable:$true] %s170
        %173 = dma.hbm_to_vmem [thread:$0]  %s169, 16, %s171, [#allocation3]
        %s174 = sadd.s32 %s56, 7
        %s175 = sld [smem:[#allocation5 + %s174]]
        %s176 = scalar_lea.hbm %s1, %s175
        %s177 = scalar_lea.vmem [#allocation2], 7
        // Predicated region
        $region41: #{tpu_custom_call.1} parent=11 // pred_check
          _
        $region42: #{tpu_custom_call.1} parent=11 // pred_check_branch
          %179 = sbr.rel target = $region44
        $region43: #{tpu_custom_call.1} parent=11 // pred_region
          %180 = sst [smem:[#allocation10]] [#allocation25]
          %181 = sst [smem:[#allocation11]] [#allocation24]
        $region44: #{tpu_custom_call.1} parent=11 // pred_fallthru
          _
        %183 = shalt.err (0)
        %s185 = sshll.u32 %s176, 4
        %s186 = int_to_ptr.hbm [resolvable:$true] %s185
        %s187 = sshll.u32 %s177, 4
        %s188 = int_to_ptr.vmem [resolvable:$true] %s187
        %190 = dma.hbm_to_vmem [thread:$0]  %s186, 16, %s188, [#allocation3]
        %192 = dma.done [#allocation3], 16
        %194 = dma.done [#allocation3], 16
        %196 = dma.done [#allocation3], 16
        %198 = dma.done [#allocation3], 16
        %200 = dma.done [#allocation3], 16
        %202 = dma.done [#allocation3], 16
        %204 = dma.done [#allocation3], 16
        %206 = dma.done [#allocation3], 16
        %v207 = vld [vmem:[#allocation2] sm:$0xff]
        %v208 = vmul.f32 %v207, 11.313708
        %209 = vst [vmem:[%s55] sm:$0xff] %v208
        %s210 = sand.u32 %s28, 1
        %s211 = scalar_lea.sflag [#allocation7], %s210
        %s212 = sand.u32 %s28, 1
        %s213 = smul.addr %s212, 8
        %s214 = scalar_lea.vmem [#allocation6], %s213
        // Predicated region
        $region45: #{tpu_custom_call.1} parent=11 // pred_check
          %p215 = pneg %p34
        $region46: #{tpu_custom_call.1} parent=11 // pred_check_branch
          %217 = sbr.rel (%p215) target = $region48
        $region47: #{tpu_custom_call.1} parent=11 // pred_region
          %219 = vsyncadd %s211, 0
          %s220 = smul.addr %s19, 8
          %s221 = scalar_lea.hbm %s2, %s220
          %s223 = sshll.u32 %s214, 4
          %s224 = int_to_ptr.vmem [resolvable:$true] %s223
          %s225 = sshll.u32 %s221, 4
          %s226 = int_to_ptr.hbm [resolvable:$true] %s225
          %228 = dma.vmem_to_hbm [thread:$0]  %s224, 128, %s226, %s211
        $region48: #{tpu_custom_call.1} parent=11 // pred_fallthru
          _
      $region12: #{tpu_custom_call.1} parent=5 // pred_fallthru
        _
      %p229 = scmp.le.s32.totalorder 1, %s19
      // Predicated region
      $region49: #{tpu_custom_call.1} parent=5 // pred_check
        %p230 = pneg %p229
      $region50: #{tpu_custom_call.1} parent=5 // pred_check_branch
        %232 = sbr.rel (%p230) target = $region52
      $region51: #{tpu_custom_call.1} parent=5 // pred_region
        %s233 = ssub.s32 %s19, 1
        // Predicated region
        $region53: #{tpu_custom_call.1} parent=51 // pred_check
          %p234 = pneg %p40
        $region54: #{tpu_custom_call.1} parent=51 // pred_check_branch
          %236 = sbr.rel (%p234) target = $region56
        $region55: #{tpu_custom_call.1} parent=51 // pred_region
          %s237 = sand.u32 %s31, 1
          %s238 = scalar_lea.sflag [#allocation7], %s237
          %s239 = sand.u32 %s31, 1
          %s240 = smul.addr %s239, 8
          %s241 = scalar_lea.vmem [#allocation6], %s240
          %243 = dma.done %s238, 128
        $region56: #{tpu_custom_call.1} parent=51 // pred_fallthru
          _
      $region52: #{tpu_custom_call.1} parent=5 // pred_fallthru
        _
    $region6: #{tpu_custom_call.1} parent=1 // loop_footer
      %s23 = sadd.s32 1, %s19
    $region7: #{tpu_custom_call.1} parent=1 // loop_footer_branch
      %18 = sbr.rel target = $region3
    $region8: #{tpu_custom_call.1} parent=1 // loop_exit
      _
    %244 = vsyncpa [#allocation7], 1
    %s245 = scalar_lea.sflag [#allocation7], 1
    %246 = vsyncpa %s245, 1
  %247 = vsyncmov [#allocation3]
  %s248 = vpop.sfrf %247
  %p249 = scmp.eq.s32.totalorder %s248, 0
  %p250 = pneg %p249
  %252 = shalt.err (%p250)

</llo_original>
